<compile_context>
chip_gen: v6e
topology: v6e:2x2x1
jax: 0.10.0
libtpu: 0.0.40
codegen_flags: <defaults>
</compile_context>

<pallas_src>
import functools

import jax
import jax.numpy as jnp
from jax.experimental import pallas as pl
from jax.experimental.pallas import tpu as pltpu


_VMEM_LIMIT = 48 * 1024 * 1024  # safe on v5e/v6e (128 MiB) and v7x (64 MiB)


def _round_up(n, m):
    return ((n + m - 1) // m) * m


# ----------------------------------------------------------------------------
# Standalone LayerNorm kernel (generic PreNorm path for arbitrary fn)
# ----------------------------------------------------------------------------
def _layernorm_kernel(x_ref, gamma_ref, beta_ref, o_ref, *, eps):
    x = x_ref[...].astype(jnp.float32)                       # (tm, D)
    inv_d = 1.0 / x.shape[-1]
    s = jnp.sum(x, axis=-1, keepdims=True)                   # one pass:
    sq = jnp.sum(x * x, axis=-1, keepdims=True)              #   sum & sumsq
    mean = s * inv_d
    var = jnp.maximum(sq * inv_d - mean * mean, 0.0)          # biased (torch LN)
    inv = jax.lax.rsqrt(var + eps)
    y = (x - mean) * inv
    y = y * gamma_ref[...].astype(jnp.float32) + beta_ref[...].astype(jnp.float32)
    o_ref[...] = y.astype(o_ref.dtype)


def layernorm_pallas(x2d, gamma, beta, *, eps=1e-5, tm=512):
    R, D = x2d.shape
    tm = min(tm, _round_up(R, 8))
    gamma2 = gamma.reshape(1, D)
    beta2 = beta.reshape(1, D)
    return pl.pallas_call(
        functools.partial(_layernorm_kernel, eps=eps),
        out_shape=jax.ShapeDtypeStruct((R, D), x2d.dtype),
        grid_spec=pltpu.PrefetchScalarGridSpec(
            num_scalar_prefetch=0,
            grid=(pl.cdiv(R, tm),),
            in_specs=[
                pl.BlockSpec((tm, D), lambda i: (i, 0)),
                pl.BlockSpec((1, D), lambda i: (0, 0)),
                pl.BlockSpec((1, D), lambda i: (0, 0)),
            ],
            out_specs=pl.BlockSpec((tm, D), lambda i: (i, 0)),
        ),
        compiler_params=pltpu.CompilerParams(
            dimension_semantics=("parallel",),
            vmem_limit_bytes=_VMEM_LIMIT),
    )(x2d, gamma2, beta2)


# ----------------------------------------------------------------------------
# Fused PreNorm(Linear) kernel: o = LayerNorm(x) @ W^T + b
#   grid = (row tiles, Dout tiles); the x tile block index is constant across
#   the inner (Dout) axis so Pallas does not re-DMA it, and the normalized
#   tile is cached in VMEM scratch (computed only when j == 0).
# ----------------------------------------------------------------------------
def _prenorm_linear_kernel(x_ref, gamma_ref, beta_ref, w_ref, b_ref,
                           o_ref, xn_ref, *, eps):
    j = pl.program_id(1)

    @pl.when(j == 0)
    def _():
        x = x_ref[...].astype(jnp.float32)                   # (tm, D)
        inv_d = 1.0 / x.shape[-1]
        s = jnp.sum(x, axis=-1, keepdims=True)
        sq = jnp.sum(x * x, axis=-1, keepdims=True)
        mean = s * inv_d
        var = jnp.maximum(sq * inv_d - mean * mean, 0.0)
        inv = jax.lax.rsqrt(var + eps)
        y = (x - mean) * inv
        y = y * gamma_ref[...].astype(jnp.float32) + beta_ref[...].astype(jnp.float32)
        xn_ref[...] = y.astype(xn_ref.dtype)

    # xn: (tm, D), w tile: (tn, D)  ->  xn @ w_tile.T  (trans-B, no data move)
    acc = jax.lax.dot_general(
        xn_ref[...], w_ref[...],
        dimension_numbers=(((1,), (1,)), ((), ())),
        preferred_element_type=jnp.float32)                  # (tm, tn), f32 acc
    acc = acc + b_ref[...].astype(jnp.float32)
    o_ref[...] = acc.astype(o_ref.dtype)


def prenorm_linear_pallas(x2d, gamma, beta, w, b, *, eps=1e-5, tm=256, tn=512):
    """x2d: (R, D); w: (Dout, D) (PyTorch nn.Linear layout); b: (Dout,)."""
    R, D = x2d.shape
    Dout = w.shape[0]
    tm = min(tm, _round_up(R, 8))
    tn = min(tn, _round_up(Dout, 128))       # lane-dense output tiles
    grid = (pl.cdiv(R, tm), pl.cdiv(Dout, tn))

    gamma2 = gamma.reshape(1, D)
    beta2 = beta.reshape(1, D)
    b2 = b.reshape(1, Dout)
    mm_dtype = w.dtype                       # normalized x cast to matmul dtype

    return pl.pallas_call(
        functools.partial(_prenorm_linear_kernel, eps=eps),
        out_shape=jax.ShapeDtypeStruct((R, Dout), x2d.dtype),
        grid_spec=pltpu.PrefetchScalarGridSpec(
            num_scalar_prefetch=0,
            grid=grid,
            in_specs=[
                pl.BlockSpec((tm, D), lambda i, j: (i, 0)),   # x (revisited over j)
                pl.BlockSpec((1, D), lambda i, j: (0, 0)),    # gamma
                pl.BlockSpec((1, D), lambda i, j: (0, 0)),    # beta
                pl.BlockSpec((tn, D), lambda i, j: (j, 0)),   # W rows = output cols
                pl.BlockSpec((1, tn), lambda i, j: (0, j)),   # bias
            ],
            out_specs=pl.BlockSpec((tm, tn), lambda i, j: (i, j)),
            scratch_shapes=[pltpu.VMEM((tm, D), mm_dtype)],   # cached norm(x) tile
        ),
        compiler_params=pltpu.CompilerParams(
            # scratch is resident across the Dout axis -> "arbitrary"
            dimension_semantics=("parallel", "arbitrary"),
            vmem_limit_bytes=_VMEM_LIMIT),
    )(x2d, gamma2, beta2, w, b2)


# ----------------------------------------------------------------------------
# PreNorm wrappers
# ----------------------------------------------------------------------------
def prenorm_linear_forward(x, ln_gamma, ln_beta, w, b, *, eps=1e-5):
    """Fused fast path: fn = Linear(dim, dim_out). x: [B, N, D]."""
    B, N, D = x.shape
    out2d = prenorm_linear_pallas(x.reshape(B * N, D), ln_gamma, ln_beta, w, b,
                                  eps=eps)
    return out2d.reshape(B, N, w.shape[0])


def prenorm_forward(x, ln_gamma, ln_beta, fn, **kwargs):
    """Generic path (arbitrary fn): LayerNorm over last dim, then fn."""
    B, N, D = x.shape
    y = layernorm_pallas(x.reshape(B * N, D), ln_gamma, ln_beta).reshape(B, N, D)
    return fn(y, **kwargs)


if __name__ == "__main__":
    key = jax.random.PRNGKey(0)
    B, N, D = 2, 8, 128
    Dout = 128
    kx, kg, kbt, kw, kb = jax.random.split(key, 5)

    x = jax.random.normal(kx, (B, N, D), dtype=jnp.float32)

    # LayerNorm params (non-trivial values to exercise the affine path)
    ln_gamma = 1.0 + 0.1 * jax.random.normal(kg, (D,), jnp.float32)
    ln_beta = 0.1 * jax.random.normal(kbt, (D,), jnp.float32)

    # fn = Linear(D, Dout) in PyTorch layout: W (Dout, D), b (Dout,)
    w = jax.random.normal(kw, (Dout, D), jnp.float32) * 0.02
    b = jax.random.normal(kb, (Dout,), jnp.float32) * 0.02

    # fused Pallas PreNorm(Linear)
    out = prenorm_linear_forward(x, ln_gamma, ln_beta, w, b)
    jax.block_until_ready(out)

    # plain-JAX reference
    mean = jnp.mean(x, axis=-1, keepdims=True)
    var = jnp.mean((x - mean) ** 2, axis=-1, keepdims=True)
    y_ref = (x - mean) * jax.lax.rsqrt(var + 1e-5) * ln_gamma + ln_beta
    out_ref = jnp.einsum("bnd,od->bno", y_ref, w) + b
    assert jnp.allclose(out, out_ref, atol=1e-4, rtol=1e-4)

    # generic PreNorm path (arbitrary fn) — check the standalone LN kernel too
    out_ln = prenorm_forward(x, ln_gamma, ln_beta, lambda y: y)
    jax.block_until_ready(out_ln)
    assert jnp.allclose(out_ln, y_ref, atol=1e-4, rtol=1e-4)

    print("KERNEL_OK")
</pallas_src>

<mosaic_0001>
module attributes {stable_mosaic.version = 11 : i64} {
  func.func @_prenorm_linear_kernel(%arg0: i32, %arg1: i32, %arg2: memref<16x128xf32, #tpu.memory_space<vmem>>, %arg3: memref<1x128xf32, #tpu.memory_space<vmem>>, %arg4: memref<1x128xf32, #tpu.memory_space<vmem>>, %arg5: memref<128x128xf32, #tpu.memory_space<vmem>>, %arg6: memref<1x128xf32, #tpu.memory_space<vmem>>, %arg7: memref<16x128xf32, #tpu.memory_space<vmem>>, %arg8: memref<16x128xf32, #tpu.memory_space<vmem>>) attributes {dimension_semantics = [#tpu.dimension_semantics<parallel>, #tpu.dimension_semantics<arbitrary>], iteration_bounds = array<i64: 1, 1>, scalar_prefetch = 0 : i64, scratch_operands = 1 : i64, tpu.core_type = #tpu.core_type<tc>, window_params = [{transform_indices = @transform_0, window_bounds = array<i64: 16, 128>}, {pipeline_mode = #tpu.pipeline_mode<synchronous>, transform_indices = @transform_1, window_bounds = array<i64: 1, 128>}, {pipeline_mode = #tpu.pipeline_mode<synchronous>, transform_indices = @transform_2, window_bounds = array<i64: 1, 128>}, {transform_indices = @transform_3, window_bounds = array<i64: 128, 128>}, {transform_indices = @transform_4, window_bounds = array<i64: 1, 128>}, {transform_indices = @transform_5, window_bounds = array<i64: 16, 128>}]} {
    %c0_i32 = arith.constant 0 : i32
    %0 = arith.cmpi eq, %arg1, %c0_i32 : i32
    %1 = arith.extui %0 : i1 to i32
    %c0_i32_0 = arith.constant 0 : i32
    %2 = arith.cmpi ne, %1, %c0_i32_0 : i32
    scf.if %2 {
      %c0_8 = arith.constant 0 : index
      %c0_9 = arith.constant 0 : index
      %10 = vector.load %arg2[%c0_8, %c0_9] : memref<16x128xf32, #tpu.memory_space<vmem>>, vector<16x128xf32>
      %cst_10 = arith.constant dense<0.000000e+00> : vector<16xf32>
      %11 = vector.multi_reduction <add>, %10, %cst_10 [1] : vector<16x128xf32> to vector<16xf32>
      %12 = vector.shape_cast %11 : vector<16xf32> to vector<16x1xf32>
      %13 = arith.mulf %10, %10 : vector<16x128xf32>
      %cst_11 = arith.constant dense<0.000000e+00> : vector<16xf32>
      %14 = vector.multi_reduction <add>, %13, %cst_11 [1] : vector<16x128xf32> to vector<16xf32>
      %15 = vector.shape_cast %14 : vector<16xf32> to vector<16x1xf32>
      %cst_12 = arith.constant 7.812500e-03 : f32
      %16 = vector.broadcast %cst_12 : f32 to vector<16x1xf32>
      %17 = arith.mulf %12, %16 : vector<16x1xf32>
      %cst_13 = arith.constant 7.812500e-03 : f32
      %18 = vector.broadcast %cst_13 : f32 to vector<16x1xf32>
      %19 = arith.mulf %15, %18 : vector<16x1xf32>
      %20 = arith.mulf %17, %17 : vector<16x1xf32>
      %21 = arith.subf %19, %20 : vector<16x1xf32>
      %cst_14 = arith.constant 0.000000e+00 : f32
      %22 = vector.broadcast %cst_14 : f32 to vector<16x1xf32>
      %23 = arith.maximumf %21, %22 : vector<16x1xf32>
      %cst_15 = arith.constant 9.99999974E-6 : f32
      %24 = vector.broadcast %cst_15 : f32 to vector<16x1xf32>
      %25 = arith.addf %23, %24 : vector<16x1xf32>
      %26 = math.rsqrt %25 : vector<16x1xf32>
      %27 = vector.broadcast %17 : vector<16x1xf32> to vector<16x128xf32>
      %28 = arith.subf %10, %27 : vector<16x128xf32>
      %29 = vector.broadcast %26 : vector<16x1xf32> to vector<16x128xf32>
      %30 = arith.mulf %28, %29 : vector<16x128xf32>
      %c0_16 = arith.constant 0 : index
      %c0_17 = arith.constant 0 : index
      %31 = vector.load %arg3[%c0_16, %c0_17] : memref<1x128xf32, #tpu.memory_space<vmem>>, vector<1x128xf32>
      %32 = vector.broadcast %31 : vector<1x128xf32> to vector<16x128xf32>
      %33 = arith.mulf %30, %32 : vector<16x128xf32>
      %c0_18 = arith.constant 0 : index
      %c0_19 = arith.constant 0 : index
      %34 = vector.load %arg4[%c0_18, %c0_19] : memref<1x128xf32, #tpu.memory_space<vmem>>, vector<1x128xf32>
      %35 = vector.broadcast %34 : vector<1x128xf32> to vector<16x128xf32>
      %36 = arith.addf %33, %35 : vector<16x128xf32>
      %c0_20 = arith.constant 0 : index
      %c0_21 = arith.constant 0 : index
      %37 = vector.load %arg8[%c0_20, %c0_21] : memref<16x128xf32, #tpu.memory_space<vmem>>, vector<16x128xf32>
      tpu.vector_store %arg8[%c0_20, %c0_21], %36 {strides = array<i32>} : memref<16x128xf32, #tpu.memory_space<vmem>>, vector<16x128xf32>,
    } else {
    }
    %c0 = arith.constant 0 : index
    %c0_1 = arith.constant 0 : index
    %3 = vector.load %arg8[%c0, %c0_1] : memref<16x128xf32, #tpu.memory_space<vmem>>, vector<16x128xf32>
    %c0_2 = arith.constant 0 : index
    %c0_3 = arith.constant 0 : index
    %4 = vector.load %arg5[%c0_2, %c0_3] : memref<128x128xf32, #tpu.memory_space<vmem>>, vector<128x128xf32>
    %cst = arith.constant dense<0.000000e+00> : vector<16x128xf32>
    %5 = tpu.matmul %3, %4, %cst {dimension_numbers = #tpu.dot_dimension_numbers<[1], [1], [0], [0], [0, 0, 1, 0], [], []>} : vector<16x128xf32>, vector<128x128xf32>, vector<16x128xf32> -> vector<16x128xf32>
    %c0_4 = arith.constant 0 : index
    %c0_5 = arith.constant 0 : index
    %6 = vector.load %arg6[%c0_4, %c0_5] : memref<1x128xf32, #tpu.memory_space<vmem>>, vector<1x128xf32>
    %7 = vector.broadcast %6 : vector<1x128xf32> to vector<16x128xf32>
    %8 = arith.addf %5, %7 : vector<16x128xf32>
    %c0_6 = arith.constant 0 : index
    %c0_7 = arith.constant 0 : index
    %9 = vector.load %arg7[%c0_6, %c0_7] : memref<16x128xf32, #tpu.memory_space<vmem>>, vector<16x128xf32>
    tpu.vector_store %arg7[%c0_6, %c0_7], %8 {strides = array<i32>} : memref<16x128xf32, #tpu.memory_space<vmem>>, vector<16x128xf32>,
    return
  }
  func.func @transform_0(%arg0: i32, %arg1: i32) -> (i32, i32) {
    %c0_i32 = arith.constant 0 : i32
    %c0_i32_0 = arith.constant 0 : i32
    return %arg0, %c0_i32 : i32, i32
  }
  func.func @transform_1(%arg0: i32, %arg1: i32) -> (i32, i32) {
    %c0_i32 = arith.constant 0 : i32
    %c0_i32_0 = arith.constant 0 : i32
    %c0_i32_1 = arith.constant 0 : i32
    return %c0_i32, %c0_i32_0 : i32, i32
  }
  func.func @transform_2(%arg0: i32, %arg1: i32) -> (i32, i32) {
    %c0_i32 = arith.constant 0 : i32
    %c0_i32_0 = arith.constant 0 : i32
    %c0_i32_1 = arith.constant 0 : i32
    return %c0_i32, %c0_i32_0 : i32, i32
  }
  func.func @transform_3(%arg0: i32, %arg1: i32) -> (i32, i32) {
    %c0_i32 = arith.constant 0 : i32
    %c0_i32_0 = arith.constant 0 : i32
    return %arg1, %c0_i32 : i32, i32
  }
  func.func @transform_4(%arg0: i32, %arg1: i32) -> (i32, i32) {
    %c0_i32 = arith.constant 0 : i32
    %c0_i32_0 = arith.constant 0 : i32
    return %c0_i32, %arg1 : i32, i32
  }
  func.func @transform_5(%arg0: i32, %arg1: i32) -> (i32, i32) {
    %c0_i32 = arith.constant 0 : i32
    return %arg0, %arg1 : i32, i32
  }
}

</mosaic_0001>

<llo_original>
// kernel: tpu_custom_call.1
$region0: #{tpu_custom_call.1}
  #allocation0 [shape = 'u32[]', space=smem, size = 0x4, offset = 0x4, fixed_abs, tag = 'smem constant byte address 0x4 - core index']
  #allocation1 [shape = 'u32[144,128]{1,0:T(1,128)}', space=vmem, size = 0x12000, scoped, tag = 'internal scratch']
  #allocation2 [shape = 'f32[16,128]{1,0:T(8,128)}', space=vmem, size = 0x2000, scoped, tag = 'scratch operand']
  %s0 = inlined_call_operand.hbm [shape: f32[16,128], index: 0, kind: input, shape index: {}]
  %s1 = inlined_call_operand.vmem [shape: f32[1,128], index: 1, kind: input, shape index: {}]
  %s2 = inlined_call_operand.vmem [shape: f32[1,128], index: 2, kind: input, shape index: {}]
  %s3 = inlined_call_operand.hbm [shape: f32[128,128], index: 3, kind: input, shape index: {}]
  %s4 = inlined_call_operand.vmem [shape: f32[1,128], index: 4, kind: input, shape index: {}]
  %s5 = inlined_call_operand.hbm [shape: f32[16,128], index: 5, kind: output, shape index: {}]
  %s6 = sld [smem:[#allocation0]]
  $region42: #{tpu_custom_call.1} parent=0
    _
  %s8 = ssub.s32 1, %s6
  %s9 = scalar_select 0, %s8, %s6
  $region1: #{tpu_custom_call.1} parent=0
    #allocation3 [shape = 'u8[8192]{0}', space=vmem, size = 0x2000, scoped, tag = 'input window, operand 0, single buffered']
    #allocation4 [shape = 's32[1]{0}', space=sflag, size = 0x4, scoped, tag = 'scoped memory for tpu_custom_call.1']
    #allocation5 [shape = 's32[1]{0}', space=sflag, size = 0x4, scoped, tag = 'scoped memory for tpu_custom_call.1']
    #allocation6 [shape = 'u8[65536]{0}', space=vmem, size = 0x10000, scoped, tag = 'input window, operand 3, single buffered']
    #allocation7 [shape = 's32[1]{0}', space=sflag, size = 0x4, scoped, tag = 'scoped memory for tpu_custom_call.1']
    #allocation8 [shape = 'u8[8192]{0}', space=vmem, size = 0x2000, scoped, tag = 'output window, operand 0, single buffered']
    %10 = vsyncpa [#allocation4], 0
    %11 = vsyncpa [#allocation7], 0
    %12 = vsyncpa [#allocation5], 0
    // Predicated region
    $region2: #{tpu_custom_call.1} parent=1 // pred_check
      _
    $region3: #{tpu_custom_call.1} parent=1 // pred_check_branch
      %14 = sbr.rel (0) target = $region5
    $region4: #{tpu_custom_call.1} parent=1 // pred_region
      %s16 = ssub.s32 256, 256
      %17 = vsyncadd [#allocation4], %s16
      %s18 = sshll.u32 [#allocation3], 4
      %s19 = int_to_ptr.vmem [resolvable:$true] %s18
      %24 = dma.hbm_to_vmem [thread:$0]  %s0, 256, %s19, [#allocation4], 128, 128, 8
    $region5: #{tpu_custom_call.1} parent=1 // pred_fallthru
      _
    // Predicated region
    $region6: #{tpu_custom_call.1} parent=1 // pred_check
      _
    $region7: #{tpu_custom_call.1} parent=1 // pred_check_branch
      %26 = sbr.rel (0) target = $region9
    $region8: #{tpu_custom_call.1} parent=1 // pred_region
      _
    $region9: #{tpu_custom_call.1} parent=1 // pred_fallthru
      _
    // Predicated region
    $region10: #{tpu_custom_call.1} parent=1 // pred_check
      _
    $region11: #{tpu_custom_call.1} parent=1 // pred_check_branch
      %28 = sbr.rel (0) target = $region13
    $region12: #{tpu_custom_call.1} parent=1 // pred_region
      _
    $region13: #{tpu_custom_call.1} parent=1 // pred_fallthru
      _
    // Predicated region
    $region14: #{tpu_custom_call.1} parent=1 // pred_check
      _
    $region15: #{tpu_custom_call.1} parent=1 // pred_check_branch
      %30 = sbr.rel (0) target = $region17
    $region16: #{tpu_custom_call.1} parent=1 // pred_region
      %s32 = ssub.s32 2048, 2048
      %33 = vsyncadd [#allocation7], %s32
      %s34 = sshll.u32 [#allocation6], 4
      %s35 = int_to_ptr.vmem [resolvable:$true] %s34
      %40 = dma.hbm_to_vmem [thread:$0]  %s3, 2048, %s35, [#allocation7], 128, 128, 8
    $region17: #{tpu_custom_call.1} parent=1 // pred_fallthru
      _
    // Predicated region
    $region18: #{tpu_custom_call.1} parent=1 // pred_check
      _
    $region19: #{tpu_custom_call.1} parent=1 // pred_check_branch
      %42 = sbr.rel (0) target = $region21
    $region20: #{tpu_custom_call.1} parent=1 // pred_region
      _
    $region21: #{tpu_custom_call.1} parent=1 // pred_fallthru
      _
    // Predicated region
    $region22: #{tpu_custom_call.1} parent=1 // pred_check
      _
    $region23: #{tpu_custom_call.1} parent=1 // pred_check_branch
      %44 = sbr.rel (0) target = $region25
    $region24: #{tpu_custom_call.1} parent=1 // pred_region
      %45 = dma.done [#allocation4], 256
    $region25: #{tpu_custom_call.1} parent=1 // pred_fallthru
      _
    // Predicated region
    $region26: #{tpu_custom_call.1} parent=1 // pred_check
      _
    $region27: #{tpu_custom_call.1} parent=1 // pred_check_branch
      %47 = sbr.rel (0) target = $region29
    $region28: #{tpu_custom_call.1} parent=1 // pred_region
      %48 = dma.done [#allocation7], 2048
    $region29: #{tpu_custom_call.1} parent=1 // pred_fallthru
      _
    %p49 = scmp.eq.s32.totalorder 0, 0
    // Predicated region
    $region30: #{tpu_custom_call.1} parent=1 // pred_check
      %p50 = pneg %p49
    $region31: #{tpu_custom_call.1} parent=1 // pred_check_branch
      %52 = sbr.rel (%p50) target = $region33
    $region32: #{tpu_custom_call.1} parent=1 // pred_region
      %v53 = vld [vmem:[#allocation3] sm:$0xff]
      %v54 = vld [vmem:[#allocation3 + $0x8] sm:$0xff]
      %55 = vadd.xlane.f32.xlu0 %v53
      %v56 = vpop.xlane.xlu0 %55
      %57 = vadd.xlane.f32.xlu0 %v54
      %v58 = vpop.xlane.xlu0 %57
      %v59 = vmul.f32 %v53, %v53
      %v60 = vmul.f32 %v54, %v54
      %61 = vadd.xlane.f32.xlu0 %v59
      %v62 = vpop.xlane.xlu0 %61
      %63 = vadd.xlane.f32.xlu0 %v60
      %v64 = vpop.xlane.xlu0 %63
      %v65 = vmul.f32 %v56, 0.0078125
      %v66 = vmul.f32 %v58, 0.0078125
      %v67 = vmul.f32 %v62, 0.0078125
      %v68 = vmul.f32 %v64, 0.0078125
      %v69 = vmul.f32 %v65, %v65
      %v70 = vmul.f32 %v66, %v66
      %v71 = vsub.f32 %v67, %v69
      %v72 = vsub.f32 %v68, %v70
      %v73 = vmax.f32 %v71, 0.0
      %v74 = vmax.f32 %v72, 0.0
      %v75 = vadd.f32 %v73, 1e-05
      %v76 = vadd.f32 %v74, 1e-05
      %v77 = vrsqrt.pop %v75
      %v78 = vrsqrt.pop %v76
      %v79 = vsub.f32 %v53, %v65
      %v80 = vsub.f32 %v54, %v66
      %v81 = vmul.f32 %v79, %v77
      %v82 = vmul.f32 %v80, %v78
      %v83 = vld [vmem:[%s1] sm:$0x1]
      %v85 = vlaneseq
      %v86 = vshrl.u32 %v85, 7
      %v87 = vsub.s32 0, %v86
      %v88 = vrot.slane %v83, %v87
      %v90 = vmul.f32 %v81, %v88
      %v91 = vmul.f32 %v82, %v88
      %v92 = vld [vmem:[%s2] sm:$0x1]
      %v94 = vlaneseq
      %v95 = vshrl.u32 %v94, 7
      %v96 = vsub.s32 0, %v95
      %v97 = vrot.slane %v92, %v96
      %v99 = vadd.f32 %v90, %v97
      %v100 = vadd.f32 %v91, %v97
      %101 = vst [vmem:[#allocation2] sm:$0xff] %v99
      %102 = vst [vmem:[#allocation2 + $0x8] sm:$0xff] %v100
    $region33: #{tpu_custom_call.1} parent=1 // pred_fallthru
      _
    %v103 = vld [vmem:[#allocation2] sm:$0xff]
    %v104 = vld [vmem:[#allocation2 + $0x8] sm:$0xff]
    %v105 = vld [vmem:[#allocation6] sm:$0xff]
    %v106 = vld [vmem:[#allocation6 + $0x8] sm:$0xff]
    %v107 = vld [vmem:[#allocation6 + $0x10] sm:$0xff]
    %v108 = vld [vmem:[#allocation6 + $0x18] sm:$0xff]
    %v109 = vld [vmem:[#allocation6 + $0x20] sm:$0xff]
    %v110 = vld [vmem:[#allocation6 + $0x28] sm:$0xff]
    %v111 = vld [vmem:[#allocation6 + $0x30] sm:$0xff]
    %v112 = vld [vmem:[#allocation6 + $0x38] sm:$0xff]
    %v113 = vld [vmem:[#allocation6 + $0x40] sm:$0xff]
    %v114 = vld [vmem:[#allocation6 + $0x48] sm:$0xff]
    %v115 = vld [vmem:[#allocation6 + $0x50] sm:$0xff]
    %v116 = vld [vmem:[#allocation6 + $0x58] sm:$0xff]
    %v117 = vld [vmem:[#allocation6 + $0x60] sm:$0xff]
    %v118 = vld [vmem:[#allocation6 + $0x68] sm:$0xff]
    %v119 = vld [vmem:[#allocation6 + $0x70] sm:$0xff]
    %v120 = vld [vmem:[#allocation6 + $0x78] sm:$0xff]
    %v121 = vld [vmem:[%s4] sm:$0x1]
    %v123 = vlaneseq
    %v124 = vshrl.u32 %v123, 7
    %v125 = vsub.s32 0, %v124
    %v126 = vrot.slane %v121, %v125
    %128 = vmatprep.subr.mxu0 0.0
    %129 = vmatpush1.xpose.msra.mxu0 %v120
    %130 = vmatprep.subr.mxu0 0.0
    %131 = vmatpush1.xpose.msra.mxu0 %v119
    %132 = vmatprep.subr.mxu0 0.0
    %133 = vmatpush1.xpose.msra.mxu0 %v118
    %134 = vmatprep.subr.mxu0 0.0
    %135 = vmatpush1.xpose.msra.mxu0 %v117
    %136 = vmatprep.subr.mxu0 0.0
    %137 = vmatpush1.xpose.msra.mxu0 %v116
    %138 = vmatprep.subr.mxu0 0.0
    %139 = vmatpush1.xpose.msra.mxu0 %v115
    %140 = vmatprep.subr.mxu0 0.0
    %141 = vmatpush1.xpose.msra.mxu0 %v114
    %142 = vmatprep.subr.mxu0 0.0
    %143 = vmatpush1.xpose.msra.mxu0 %v113
    %144 = vmatprep.subr.mxu0 0.0
    %145 = vmatpush1.xpose.msra.mxu0 %v112
    %146 = vmatprep.subr.mxu0 0.0
    %147 = vmatpush1.xpose.msra.mxu0 %v111
    %148 = vmatprep.subr.mxu0 0.0
    %149 = vmatpush1.xpose.msra.mxu0 %v110
    %150 = vmatprep.subr.mxu0 0.0
    %151 = vmatpush1.xpose.msra.mxu0 %v109
    %152 = vmatprep.subr.mxu0 0.0
    %153 = vmatpush1.xpose.msra.mxu0 %v108
    %154 = vmatprep.subr.mxu0 0.0
    %155 = vmatpush1.xpose.msra.mxu0 %v107
    %156 = vmatprep.subr.mxu0 0.0
    %157 = vmatpush1.xpose.msra.mxu0 %v106
    %158 = vmatprep.subr.mxu0 0.0
    %159 = vmatpush1.xpose.msra.mxu0 %v105
    %160 = vmatprep.subr.mxu0 0.0
    %161 = vmatpush2.xpose.msra.mxu0 0.0
    %162 = vmatprep.subr.mxu0 0.0
    %163 = vmatpush2.xpose.msra.mxu0 0.0
    %164 = vmatprep.subr.mxu0 0.0
    %165 = vmatpush2.xpose.msra.mxu0 0.0
    %166 = vmatprep.subr.mxu0 0.0
    %167 = vmatpush2.xpose.msra.mxu0 0.0
    %168 = vmatprep.subr.mxu0 0.0
    %169 = vmatpush2.xpose.msra.mxu0 0.0
    %170 = vmatprep.subr.mxu0 0.0
    %171 = vmatpush2.xpose.msra.mxu0 0.0
    %172 = vmatprep.subr.mxu0 0.0
    %173 = vmatpush2.xpose.msra.mxu0 0.0
    %174 = vmatprep.subr.mxu0 0.0
    %175 = vmatpush2.xpose.msra.mxu0 0.0
    %176 = vmatprep.subr.mxu0 0.0
    %177 = vmatpush2.xpose.msra.mxu0 0.0
    %178 = vmatprep.subr.mxu0 0.0
    %179 = vmatpush2.xpose.msra.mxu0 0.0
    %180 = vmatprep.subr.mxu0 0.0
    %181 = vmatpush2.xpose.msra.mxu0 0.0
    %182 = vmatprep.subr.mxu0 0.0
    %183 = vmatpush2.xpose.msra.mxu0 0.0
    %184 = vmatprep.subr.mxu0 0.0
    %185 = vmatpush2.xpose.msra.mxu0 0.0
    %186 = vmatprep.subr.mxu0 0.0
    %187 = vmatpush2.xpose.msra.mxu0 0.0
    %188 = vmatprep.subr.mxu0 0.0
    %189 = vmatpush2.xpose.msra.mxu0 0.0
    %190 = vmatprep.subr.mxu0 0.0
    %191 = vmatpush2.xpose.msra.mxu0 0.0
    %192 = vmatprep.mubr.f32.mxu0 0.0
    %193 = vmatmul.mubr.f32.gmra.mxu0 %v103
    %v194 = vpop.f32.mrf.mxu0
    %v195 = vadd.f32 %v126, %v194
    %v196 = vpop.f32.mrf.mxu0
    %197 = vmatprep.mubr.f32.mxu0 0.0
    %198 = vmatmul.mubr.f32.gmra.mxu0 %v104
    %v199 = vpop.f32.mrf.mxu0
    %v200 = vadd.f32 %v126, %v199
    %v201 = vpop.f32.mrf.mxu0
    %202 = vdwg.mxu0
    %203 = vst [vmem:[#allocation8] sm:$0xff] %v195
    %204 = vst [vmem:[#allocation8 + $0x8] sm:$0xff] %v200
    // Predicated region
    $region34: #{tpu_custom_call.1} parent=1 // pred_check
      _
    $region35: #{tpu_custom_call.1} parent=1 // pred_check_branch
      %206 = sbr.rel (0) target = $region37
    $region36: #{tpu_custom_call.1} parent=1 // pred_region
      %s208 = ssub.s32 256, 256
      %209 = vsyncadd [#allocation5], %s208
      %s210 = sshll.u32 [#allocation8], 4
      %s211 = int_to_ptr.vmem [resolvable:$true] %s210
      %216 = dma.vmem_to_hbm [thread:$0]  %s211, 256, %s5, [#allocation5], 128, 128, 8
    $region37: #{tpu_custom_call.1} parent=1 // pred_fallthru
      _
    // Predicated region
    $region38: #{tpu_custom_call.1} parent=1 // pred_check
      _
    $region39: #{tpu_custom_call.1} parent=1 // pred_check_branch
      %218 = sbr.rel (0) target = $region41
    $region40: #{tpu_custom_call.1} parent=1 // pred_region
      %219 = dma.done [#allocation5], 256
    $region41: #{tpu_custom_call.1} parent=1 // pred_fallthru
      _
    %220 = vsyncpa [#allocation4], 1
    %221 = vsyncpa [#allocation7], 1
    %222 = vsyncpa [#allocation5], 1

</llo_original>
